<compile_context>
chip_gen: v6e
topology: v6e:2x2x1
jax: 0.10.0
libtpu: 0.0.40
codegen_flags: <defaults>
</compile_context>

<pallas_src>
import jax
import jax.numpy as jnp
from jax.experimental import pallas as pl
from jax.experimental.pallas import tpu as pltpu

VOC_NODE_INPUT_DIM = 14

_NODE_X_MEAN = jnp.array(
    [0.46977347, 0.44679317, 0.40790915, 0.070808627, 0.068686441,
     0.068498217, 0.67777938, 0.65244222, 0.62096798, 0.27554795,
     0.25910738, 0.22901227, 242.61935, 289.85367], dtype=jnp.float32)

_NODE_X_STD = jnp.array(
    [0.26218116, 0.25831082, 0.27416739, 0.057440419, 0.056832556,
     0.057100497, 0.25929087, 0.26201612, 0.27675411, 0.25456995,
     0.2514092, 0.2618233, 151.52475, 176.30779], dtype=jnp.float32)


def _round_up(x: int, m: int) -> int:
    return ((x + m - 1) // m) * m


def _coco_node_encoder_kernel(w_ref, b_ref, x_ref, o_ref):
    # Normalization is pre-folded into w_ref / b_ref, so this is a single MXU
    # matmul (K=14, free at this arithmetic intensity) + bias add.
    o_ref[...] = (
        jnp.dot(x_ref[...], w_ref[...], preferred_element_type=jnp.float32)
        + b_ref[...]
    ).astype(o_ref.dtype)


def coco_node_encoder(x, weight, bias, *, out_dtype=jnp.float32,
                      vmem_budget_bytes=12 * 1024 * 1024, max_tile_n=8192):
    """COCONodeEncoder forward.

    x:      [N, 14]       float32 node features
    weight: [emb_dim, 14] float32 (PyTorch nn.Linear layout)
    bias:   [emb_dim]     float32
    returns [N, emb_dim]  out_dtype (default float32, matching the module)
    """
    n, f = x.shape
    assert f == VOC_NODE_INPUT_DIM
    emb_dim = weight.shape[0]

    x = x.astype(jnp.float32)
    weight = weight.astype(jnp.float32)
    bias = bias.astype(jnp.float32)

    # ---- Fold (x - mean) / std into the Linear (one-time O(14*emb_dim), f32) ----
    inv_std = 1.0 / _NODE_X_STD                           # [14]
    w_folded = (weight * inv_std[None, :]).T              # [14, emb_dim] == (W / std).T
    b_folded = bias - weight @ (_NODE_X_MEAN * inv_std)   # [emb_dim]
    b2d = b_folded.reshape(1, emb_dim)

    out_itemsize = jnp.dtype(out_dtype).itemsize
    sublane = 16 if out_itemsize == 2 else 8               # bf16 tiles pack 16 sublanes

    # ---- tile_n from a VMEM budget (double-buffered x-tile + out-tile).
    # The (tile_n, 14) x block lane-pads to 128 in VMEM -> 512 B/row, and the
    # out block lane-pads its last dim to a multiple of 128 in VMEM.
    x_row_bytes = 4 * 128
    out_row_bytes = out_itemsize * _round_up(emb_dim, 128)
    per_row_bytes = 2 * (x_row_bytes + out_row_bytes)
    tile_cap = (vmem_budget_bytes // per_row_bytes) // sublane * sublane
    tile_cap = max(sublane, min(tile_cap, max_tile_n))

    # Aim for >= ~4 grid steps so v7x's 2 TCs both get work and the pipeline
    # overlaps input/output DMA; never exceed the VMEM-derived cap.
    tile_n = min(tile_cap, max(sublane, _round_up(pl.cdiv(n, 4), sublane)))
    grid = (pl.cdiv(n, tile_n),)   # ragged: last block's OOB rows are masked on store

    cost = pl.CostEstimate(
        flops=2 * n * f * emb_dim,
        transcendentals=0,
        bytes_accessed=n * f * 4 + n * emb_dim * out_itemsize + (f + 1) * emb_dim * 4,
    )

    out = pl.pallas_call(
        _coco_node_encoder_kernel,
        out_shape=jax.ShapeDtypeStruct((n, emb_dim), out_dtype),
        grid_spec=pltpu.PrefetchScalarGridSpec(
            num_scalar_prefetch=0,
            grid=grid,
            in_specs=[
                pl.BlockSpec((f, emb_dim), lambda i: (0, 0)),    # folded W^T (grid-invariant)
                pl.BlockSpec((1, emb_dim), lambda i: (0, 0)),    # folded bias (grid-invariant)
                pl.BlockSpec((tile_n, f), lambda i: (i, 0)),     # x row-tile (streamed, ragged)
            ],
            out_specs=pl.BlockSpec((tile_n, emb_dim), lambda i: (i, 0)),
        ),
        compiler_params=pltpu.CompilerParams(
            dimension_semantics=("parallel",)),   # rows are independent -> megacore-shardable
        cost_estimate=cost,
    )(w_folded, b2d, x)

    return out   # exact shape (n, emb_dim): no wrapper slice / extra HBM pass


def _reference(x, weight, bias):
    return ((x - _NODE_X_MEAN[None, :]) / _NODE_X_STD[None, :]) @ weight.T + bias[None, :]


if __name__ == "__main__":
    key = jax.random.PRNGKey(0)

    # Case 1: small emb_dim (< 128) and N not a multiple of the tile size
    #         -> exercises the ragged grid + direct (un-padded) output path.
    k1, k2, k3, k4, k5, k6 = jax.random.split(key, 6)
    n1, emb1 = 200, 32
    x1 = jax.random.uniform(k1, (n1, VOC_NODE_INPUT_DIM), dtype=jnp.float32) * 2.0
    bound1 = 1.0 / jnp.sqrt(jnp.float32(VOC_NODE_INPUT_DIM))
    w1 = jax.random.uniform(k2, (emb1, VOC_NODE_INPUT_DIM),
                            minval=-bound1, maxval=bound1, dtype=jnp.float32)
    b1 = jax.random.uniform(k3, (emb1,), minval=-bound1, maxval=bound1, dtype=jnp.float32)

    out1 = jax.block_until_ready(coco_node_encoder(x1, w1, b1))
    ref1 = _reference(x1, w1, b1)
    assert out1.shape == (n1, emb1)
    assert jnp.allclose(out1, ref1, atol=2e-4, rtol=2e-4), float(jnp.max(jnp.abs(out1 - ref1)))

    # Case 2: emb_dim multiple of 128 -> exercises the lane-dense output path.
    n2, emb2 = 300, 128
    x2 = jax.random.uniform(k4, (n2, VOC_NODE_INPUT_DIM), dtype=jnp.float32) * 2.0
    w2 = jax.random.uniform(k5, (emb2, VOC_NODE_INPUT_DIM),
                            minval=-bound1, maxval=bound1, dtype=jnp.float32)
    b2 = jax.random.uniform(k6, (emb2,), minval=-bound1, maxval=bound1, dtype=jnp.float32)

    out2 = jax.block_until_ready(coco_node_encoder(x2, w2, b2))
    ref2 = _reference(x2, w2, b2)
    assert out2.shape == (n2, emb2)
    assert jnp.allclose(out2, ref2, atol=2e-4, rtol=2e-4), float(jnp.max(jnp.abs(out2 - ref2)))

    print("KERNEL_OK")
</pallas_src>

<mosaic_0001>
module attributes {stable_mosaic.version = 11 : i64} {
  func.func @_coco_node_encoder_kernel(%arg0: i32, %arg1: memref<14x32xf32, #tpu.memory_space<vmem>>, %arg2: memref<1x32xf32, #tpu.memory_space<vmem>>, %arg3: memref<56x14xf32, #tpu.memory_space<vmem>>, %arg4: memref<56x32xf32, #tpu.memory_space<vmem>>) attributes {dimension_semantics = [#tpu.dimension_semantics<parallel>], iteration_bounds = array<i64: 4>, scalar_prefetch = 0 : i64, scratch_operands = 0 : i64, tpu.core_type = #tpu.core_type<tc>, window_params = [{pipeline_mode = #tpu.pipeline_mode<synchronous>, transform_indices = @transform_0, window_bounds = array<i64: 14, 32>}, {pipeline_mode = #tpu.pipeline_mode<synchronous>, transform_indices = @transform_1, window_bounds = array<i64: 1, 32>}, {transform_indices = @transform_2, window_bounds = array<i64: 56, 14>}, {transform_indices = @transform_3, window_bounds = array<i64: 56, 32>}]} {
    %c0 = arith.constant 0 : index
    %c0_0 = arith.constant 0 : index
    %0 = vector.load %arg3[%c0, %c0_0] : memref<56x14xf32, #tpu.memory_space<vmem>>, vector<56x14xf32>
    %c0_1 = arith.constant 0 : index
    %c0_2 = arith.constant 0 : index
    %1 = vector.load %arg1[%c0_1, %c0_2] : memref<14x32xf32, #tpu.memory_space<vmem>>, vector<14x32xf32>
    %cst = arith.constant dense<0.000000e+00> : vector<56x32xf32>
    %2 = tpu.matmul %0, %1, %cst {dimension_numbers = #tpu.dot_dimension_numbers<[1], [0], [0], [1], [0, 0, 1, 1], [], []>} : vector<56x14xf32>, vector<14x32xf32>, vector<56x32xf32> -> vector<56x32xf32>
    %c0_3 = arith.constant 0 : index
    %c0_4 = arith.constant 0 : index
    %3 = vector.load %arg2[%c0_3, %c0_4] : memref<1x32xf32, #tpu.memory_space<vmem>>, vector<1x32xf32>
    %4 = vector.broadcast %3 : vector<1x32xf32> to vector<56x32xf32>
    %5 = arith.addf %2, %4 : vector<56x32xf32>
    %c0_5 = arith.constant 0 : index
    %c0_6 = arith.constant 0 : index
    %6 = vector.load %arg4[%c0_5, %c0_6] : memref<56x32xf32, #tpu.memory_space<vmem>>, vector<56x32xf32>
    tpu.vector_store %arg4[%c0_5, %c0_6], %5 {strides = array<i32>} : memref<56x32xf32, #tpu.memory_space<vmem>>, vector<56x32xf32>,
    return
  }
  func.func @transform_0(%arg0: i32) -> (i32, i32) {
    %c0_i32 = arith.constant 0 : i32
    %c0_i32_0 = arith.constant 0 : i32
    %c0_i32_1 = arith.constant 0 : i32
    return %c0_i32, %c0_i32_0 : i32, i32
  }
  func.func @transform_1(%arg0: i32) -> (i32, i32) {
    %c0_i32 = arith.constant 0 : i32
    %c0_i32_0 = arith.constant 0 : i32
    %c0_i32_1 = arith.constant 0 : i32
    return %c0_i32, %c0_i32_0 : i32, i32
  }
  func.func @transform_2(%arg0: i32) -> (i32, i32) {
    %c0_i32 = arith.constant 0 : i32
    %c0_i32_0 = arith.constant 0 : i32
    return %arg0, %c0_i32 : i32, i32
  }
  func.func @transform_3(%arg0: i32) -> (i32, i32) {
    %c0_i32 = arith.constant 0 : i32
    %c0_i32_0 = arith.constant 0 : i32
    return %arg0, %c0_i32 : i32, i32
  }
}

</mosaic_0001>

<llo_original>
// kernel: tpu_custom_call.1
$region0: #{tpu_custom_call.1}
  #allocation0 [shape = 'u32[]', space=smem, size = 0x4, offset = 0x4, fixed_abs, tag = 'smem constant byte address 0x4 - core index']
  #allocation1 [shape = 'u32[144,128]{1,0:T(1,128)}', space=vmem, size = 0x12000, scoped, tag = 'internal scratch']
  %s0 = inlined_call_operand.vmem [shape: f32[14,32], index: 0, kind: input, shape index: {}]
  %s1 = inlined_call_operand.vmem [shape: f32[1,32], index: 1, kind: input, shape index: {}]
  %s2 = inlined_call_operand.vmem [shape: f32[200,14], index: 2, kind: input, shape index: {}]
  %s3 = inlined_call_operand.vmem [shape: f32[200,32], index: 3, kind: output, shape index: {}]
  %s4 = sld [smem:[#allocation0]]
  $region93: #{tpu_custom_call.1} parent=0
    _
  %s6 = ssub.s32 1, %s4
  %s7 = scalar_select 0, %s6, %s4
  $region1: #{tpu_custom_call.1} parent=0
    #allocation2 [shape = 'u8[57344]{0}', space=vmem, size = 0xe000, scoped, tag = 'output window, operand 0']
    loop: start=0, step=1, limit=6
    $region2: #{tpu_custom_call.1} parent=1 // loop_pre_header
      _
    $region3: #{tpu_custom_call.1} parent=1 // loop_header
      %s9 = sphi 0, %s13
      %p10 = scmp.ge.s32.totalorder %s9, 6
      %s17 = sphi 0, %s17
      %s19 = sphi 0, %s17
      %s20 = sphi 0, %s19
      %s34 = sphi 0, %s20
      %s38 = sphi 0, %s38
      %s40 = sphi 0, %s38
      %s41 = sphi 0, %s40
      %s55 = sphi 0, %s41
      %s61 = sphi 0, %s63
      %s64 = sphi 0, %s61
      %s65 = sphi 0, %s64
      %s81 = sphi 0, %s65
      %s87 = sphi 0, %s89
      %s90 = sphi 0, %s87
      %s91 = sphi 0, %s90
      %s107 = sphi 0, %s91
    $region4: #{tpu_custom_call.1} parent=1 // loop_header_branch
      %12 = sbr.rel (%p10) target = $region8
    $region5: #{tpu_custom_call.1} parent=1 // loop_body
      %s14 = ssub.s32 %s9, 1
      %s15 = ssub.s32 %s9, 2
      %s16 = sadd.s32 %s9, 1
      %s18 = sadd.s32 %s17, 1
      %p21 = scmp.eq.s32.totalorder %s9, 3
      %p22 = scmp.ne.s32.totalorder %s17, %s19
      %p23 = scmp.eq.s32.totalorder %s9, 0
      %p24 = por %p22, %p23
      %p25 = scmp.ne.s32.totalorder %s17, %s19
      %p26 = scmp.eq.s32.totalorder %s14, 3
      %p27 = por %p25, %p26
      %p28 = scmp.ne.s32.totalorder %s19, %s20
      %p29 = scmp.eq.s32.totalorder %s14, 0
      %p30 = por %p28, %p29
      %p31 = scmp.ne.s32.totalorder %s19, %s20
      %p32 = scmp.eq.s32.totalorder %s15, 3
      %p33 = por %p31, %p32
      %p35 = scmp.ne.s32.totalorder %s20, %s34
      %p36 = scmp.eq.s32.totalorder %s15, 0
      %p37 = por %p35, %p36
      %s39 = sadd.s32 %s38, 1
      %p42 = scmp.eq.s32.totalorder %s9, 3
      %p43 = scmp.ne.s32.totalorder %s38, %s40
      %p44 = scmp.eq.s32.totalorder %s9, 0
      %p45 = por %p43, %p44
      %p46 = scmp.ne.s32.totalorder %s38, %s40
      %p47 = scmp.eq.s32.totalorder %s14, 3
      %p48 = por %p46, %p47
      %p49 = scmp.ne.s32.totalorder %s40, %s41
      %p50 = scmp.eq.s32.totalorder %s14, 0
      %p51 = por %p49, %p50
      %p52 = scmp.ne.s32.totalorder %s40, %s41
      %p53 = scmp.eq.s32.totalorder %s15, 3
      %p54 = por %p52, %p53
      %p56 = scmp.ne.s32.totalorder %s41, %s55
      %p57 = scmp.eq.s32.totalorder %s15, 0
      %p58 = por %p56, %p57
      %s59 = ssub.s32 %s9, %s16
      %p60 = scmp.eq.s32.totalorder %s59, 0
      %s62 = sadd.s32 %s61, 1
      %s63 = scalar_select %p60, %s61, %s62
      %p66 = pneg %p60
      %p67 = scmp.eq.s32.totalorder %s9, 3
      %p68 = por %p66, %p67
      %p69 = scmp.ne.s32.totalorder %s61, %s64
      %p70 = scmp.eq.s32.totalorder %s9, 0
      %p71 = por %p69, %p70
      %p72 = scmp.ne.s32.totalorder %s61, %s64
      %p73 = scmp.eq.s32.totalorder %s14, 3
      %p74 = por %p72, %p73
      %p75 = scmp.ne.s32.totalorder %s64, %s65
      %p76 = scmp.eq.s32.totalorder %s14, 0
      %p77 = por %p75, %p76
      %p78 = scmp.ne.s32.totalorder %s64, %s65
      %p79 = scmp.eq.s32.totalorder %s15, 3
      %p80 = por %p78, %p79
      %p82 = scmp.ne.s32.totalorder %s65, %s81
      %p83 = scmp.eq.s32.totalorder %s15, 0
      %p84 = por %p82, %p83
      %s85 = ssub.s32 %s9, %s16
      %p86 = scmp.eq.s32.totalorder %s85, 0
      %s88 = sadd.s32 %s87, 1
      %s89 = scalar_select %p86, %s87, %s88
      %p92 = pneg %p86
      %p93 = scmp.eq.s32.totalorder %s9, 3
      %p94 = por %p92, %p93
      %p95 = scmp.ne.s32.totalorder %s87, %s90
      %p96 = scmp.eq.s32.totalorder %s9, 0
      %p97 = por %p95, %p96
      %p98 = scmp.ne.s32.totalorder %s87, %s90
      %p99 = scmp.eq.s32.totalorder %s14, 3
      %p100 = por %p98, %p99
      %p101 = scmp.ne.s32.totalorder %s90, %s91
      %p102 = scmp.eq.s32.totalorder %s14, 0
      %p103 = por %p101, %p102
      %p104 = scmp.ne.s32.totalorder %s90, %s91
      %p105 = scmp.eq.s32.totalorder %s15, 3
      %p106 = por %p104, %p105
      %p108 = scmp.ne.s32.totalorder %s91, %s107
      %p109 = scmp.eq.s32.totalorder %s15, 0
      %p110 = por %p108, %p109
      %p111 = scmp.le.s32.totalorder 1, %s9
      %p112 = scmp.lt.s32.totalorder %s9, 5
      %p113 = pnand %p111, %p112
      %p114 = pneg %p113
      // Predicated region
      $region9: #{tpu_custom_call.1} parent=5 // pred_check
        _
      $region10: #{tpu_custom_call.1} parent=5 // pred_check_branch
        %116 = sbr.rel (%p113) target = $region12
      $region11: #{tpu_custom_call.1} parent=5 // pred_region
        %s117 = ssub.s32 %s9, 1
        // Predicated region
        $region13: #{tpu_custom_call.1} parent=11 // pred_check
          %p118 = pneg %p30
        $region14: #{tpu_custom_call.1} parent=11 // pred_check_branch
          %120 = sbr.rel (%p118) target = $region16
        $region15: #{tpu_custom_call.1} parent=11 // pred_region
          _
        $region16: #{tpu_custom_call.1} parent=11 // pred_fallthru
          _
        // Predicated region
        $region17: #{tpu_custom_call.1} parent=11 // pred_check
          %p121 = pneg %p51
        $region18: #{tpu_custom_call.1} parent=11 // pred_check_branch
          %123 = sbr.rel (%p121) target = $region20
        $region19: #{tpu_custom_call.1} parent=11 // pred_region
          _
        $region20: #{tpu_custom_call.1} parent=11 // pred_fallthru
          _
      $region12: #{tpu_custom_call.1} parent=5 // pred_fallthru
        _
      %p124 = scmp.lt.s32.totalorder %s9, 4
      // Predicated region
      $region21: #{tpu_custom_call.1} parent=5 // pred_check
        %p125 = pneg %p124
      $region22: #{tpu_custom_call.1} parent=5 // pred_check_branch
        %127 = sbr.rel (%p125) target = $region24
      $region23: #{tpu_custom_call.1} parent=5 // pred_region
        // Predicated region
        $region25: #{tpu_custom_call.1} parent=23 // pred_check
          %p128 = pneg %p71
        $region26: #{tpu_custom_call.1} parent=23 // pred_check_branch
          %130 = sbr.rel (%p128) target = $region28
        $region27: #{tpu_custom_call.1} parent=23 // pred_region
          %s131 = smul.u32 7, %s9
          %s132 = ssub.s32 25, %s131
          %p133 = scmp.lt.s32.totalorder %s132, 7
          %s134 = scalar_select %p133, %s132, 7
          %s135 = smul.u32 128, %s134
          %p136 = scmp.lt.s32.totalorder %s131, 24
          %s137 = scalar_select %p136, %s131, 24
          %s138 = smul.addr %s137, 8
          %s139 = scalar_lea.vmem %s2, %s138
          %s140 = smul.u32 7, %s9
          %s141 = ssub.s32 25, %s140
          %p142 = scmp.lt.s32.totalorder %s141, 7
          %s143 = scalar_select %p142, %s141, 7
          %s144 = smul.u32 128, %s143
        $region28: #{tpu_custom_call.1} parent=23 // pred_fallthru
          _
      $region24: #{tpu_custom_call.1} parent=5 // pred_fallthru
        _
      %p145 = scmp.le.s32.totalorder 1, %s9
      %p146 = scmp.lt.s32.totalorder %s9, 5
      %p147 = pnand %p145, %p146
      %p148 = pneg %p147
      // Predicated region
      $region29: #{tpu_custom_call.1} parent=5 // pred_check
        _
      $region30: #{tpu_custom_call.1} parent=5 // pred_check_branch
        %150 = sbr.rel (%p147) target = $region32
      $region31: #{tpu_custom_call.1} parent=5 // pred_region
        %s151 = ssub.s32 %s9, 1
        %p152 = pneg %p30
        %p153 = pneg %p27
        %p154 = pneg %p51
        %p155 = pneg %p48
        %s156 = smul.u32 7, %s14
        %s157 = ssub.s32 25, %s156
        %p158 = scmp.lt.s32.totalorder %s157, 7
        %s159 = scalar_select %p158, %s157, 7
        %s160 = smul.u32 128, %s159
        %p161 = scmp.lt.s32.totalorder %s156, 24
        %s162 = scalar_select %p161, %s156, 24
        %s163 = smul.addr %s162, 8
        %s164 = scalar_lea.vmem %s2, %s163
        %p165 = pneg %p77
        %p166 = pneg %p74
        %p167 = pneg %p103
        %p168 = pneg %p100
        %s169 = sand.u32 %s90, 1
        %s170 = sand.u32 %s90, 1
        %s171 = smul.addr %s170, 56
        %s172 = scalar_lea.vmem [#allocation2], %s171
        %s173 = smul.u32 7, %s14
        %s174 = ssub.s32 25, %s173
        %p175 = scmp.lt.s32.totalorder %s174, 7
        %s176 = scalar_select %p175, %s174, 7
        %s177 = smul.u32 128, %s176
        %p178 = scmp.lt.s32.totalorder %s173, 24
        %s179 = scalar_select %p178, %s173, 24
        %s180 = smul.addr %s179, 8
        %s181 = scalar_lea.vmem %s2, %s180
        %s182 = smul.u32 7, %s14
        %s183 = ssub.s32 25, %s182
        %p184 = scmp.lt.s32.totalorder %s183, 7
        %s185 = scalar_select %p184, %s183, 7
        %s186 = smul.u32 128, %s185
        %s187 = smul.u32 7, %s14
        %s188 = ssub.s32 25, %s187
        %p189 = scmp.lt.s32.totalorder %s188, 7
        %s190 = scalar_select %p189, %s188, 7
        %s191 = smul.u32 128, %s190
        %v192 = vld [vmem:[%s181] sm:$0xff]
        %v193 = vld [vmem:[%s181 + $0x8] sm:$0xff]
        %v194 = vld [vmem:[%s181 + $0x10] sm:$0xff]
        %v195 = vld [vmem:[%s181 + $0x18] sm:$0xff]
        %v196 = vld [vmem:[%s181 + $0x20] sm:$0xff]
        %v197 = vld [vmem:[%s181 + $0x28] sm:$0xff]
        %v198 = vld [vmem:[%s181 + $0x30] sm:$0xff]
        %v199 = vld [vmem:[%s0] sm:$0xff]
        %v200 = vld [vmem:[%s0 + $0x8] sm:$0x3f]
        %v201 = vld [vmem:[%s1] sm:$0x1]
        %v203 = vlaneseq
        %v204 = vshrl.u32 %v203, 7
        %v205 = vsub.s32 0, %v204
        %v206 = vrot.slane %v201, %v205
        %vm208 = vcmask 113664
        %v210 = vsel %vm208, %v192, 0
        %v213 = vsel %vm208, %v193, 0
        %v216 = vsel %vm208, %v194, 0
        %v219 = vsel %vm208, %v195, 0
        %v222 = vsel %vm208, %v196, 0
        %v225 = vsel %vm208, %v197, 0
        %v228 = vsel %vm208, %v198, 0
        %vm230 = vcmask 1045504
        %v232 = vsel %vm230, %v200, 0
        %234 = vmatprep.subr.mxu0 0.0
        %235 = vmatpush1.msra.mxu0 0.0
        %236 = vmatprep.subr.mxu0 0.0
        %237 = vmatpush1.msra.mxu0 0.0
        %238 = vmatprep.subr.mxu0 0.0
        %239 = vmatpush1.msra.mxu0 0.0
        %240 = vmatprep.subr.mxu0 0.0
        %241 = vmatpush1.msra.mxu0 0.0
        %242 = vmatprep.subr.mxu0 0.0
        %243 = vmatpush1.msra.mxu0 0.0
        %244 = vmatprep.subr.mxu0 0.0
        %245 = vmatpush1.msra.mxu0 0.0
        %246 = vmatprep.subr.mxu0 0.0
        %247 = vmatpush1.msra.mxu0 0.0
        %248 = vmatprep.subr.mxu0 0.0
        %249 = vmatpush1.msra.mxu0 0.0
        %250 = vmatprep.subr.mxu0 0.0
        %251 = vmatpush1.msra.mxu0 0.0
        %252 = vmatprep.subr.mxu0 0.0
        %253 = vmatpush1.msra.mxu0 0.0
        %254 = vmatprep.subr.mxu0 0.0
        %255 = vmatpush1.msra.mxu0 0.0
        %256 = vmatprep.subr.mxu0 0.0
        %257 = vmatpush1.msra.mxu0 0.0
        %258 = vmatprep.subr.mxu0 0.0
        %259 = vmatpush1.msra.mxu0 0.0
        %260 = vmatprep.subr.mxu0 0.0
        %261 = vmatpush1.msra.mxu0 0.0
        %262 = vmatprep.subr.mxu0 0.0
        %263 = vmatpush1.msra.mxu0 %v232
        %264 = vmatprep.subr.mxu0 0.0
        %265 = vmatpush1.msra.mxu0 %v199
        %266 = vmatprep.subr.mxu0 0.0
        %267 = vmatpush2.msra.mxu0 0.0
        %268 = vmatprep.subr.mxu0 0.0
        %269 = vmatpush2.msra.mxu0 0.0
        %270 = vmatprep.subr.mxu0 0.0
        %271 = vmatpush2.msra.mxu0 0.0
        %272 = vmatprep.subr.mxu0 0.0
        %273 = vmatpush2.msra.mxu0 0.0
        %274 = vmatprep.subr.mxu0 0.0
        %275 = vmatpush2.msra.mxu0 0.0
        %276 = vmatprep.subr.mxu0 0.0
        %277 = vmatpush2.msra.mxu0 0.0
        %278 = vmatprep.subr.mxu0 0.0
        %279 = vmatpush2.msra.mxu0 0.0
        %280 = vmatprep.subr.mxu0 0.0
        %281 = vmatpush2.msra.mxu0 0.0
        %282 = vmatprep.subr.mxu0 0.0
        %283 = vmatpush2.msra.mxu0 0.0
        %284 = vmatprep.subr.mxu0 0.0
        %285 = vmatpush2.msra.mxu0 0.0
        %286 = vmatprep.subr.mxu0 0.0
        %287 = vmatpush2.msra.mxu0 0.0
        %288 = vmatprep.subr.mxu0 0.0
        %289 = vmatpush2.msra.mxu0 0.0
        %290 = vmatprep.subr.mxu0 0.0
        %291 = vmatpush2.msra.mxu0 0.0
        %292 = vmatprep.subr.mxu0 0.0
        %293 = vmatpush2.msra.mxu0 0.0
        %294 = vmatprep.subr.mxu0 0.0
        %295 = vmatpush2.msra.mxu0 0.0
        %296 = vmatprep.subr.mxu0 0.0
        %297 = vmatpush2.msra.mxu0 0.0
        %298 = vmatprep.mubr.f32.mxu0 0.0
        %299 = vmatmul.mubr.f32.gmra.mxu0 %v210
        %v300 = vpop.f32.mrf.mxu0
        %v301 = vadd.f32 %v206, %v300
        %v302 = vpop.f32.mrf.mxu0
        %303 = vmatprep.mubr.f32.mxu0 0.0
        %304 = vmatmul.mubr.f32.gmra.mxu0 %v213
        %v305 = vpop.f32.mrf.mxu0
        %v306 = vadd.f32 %v206, %v305
        %v307 = vpop.f32.mrf.mxu0
        %308 = vmatprep.mubr.f32.mxu0 0.0
        %309 = vmatmul.mubr.f32.gmra.mxu0 %v216
        %v310 = vpop.f32.mrf.mxu0
        %v311 = vadd.f32 %v206, %v310
        %v312 = vpop.f32.mrf.mxu0
        %313 = vmatprep.mubr.f32.mxu0 0.0
        %314 = vmatmul.mubr.f32.gmra.mxu0 %v219
        %v315 = vpop.f32.mrf.mxu0
        %v316 = vadd.f32 %v206, %v315
        %v317 = vpop.f32.mrf.mxu0
        %318 = vmatprep.mubr.f32.mxu0 0.0
        %319 = vmatmul.mubr.f32.gmra.mxu0 %v222
        %v320 = vpop.f32.mrf.mxu0
        %v321 = vadd.f32 %v206, %v320
        %v322 = vpop.f32.mrf.mxu0
        %323 = vmatprep.mubr.f32.mxu0 0.0
        %324 = vmatmul.mubr.f32.gmra.mxu0 %v225
        %v325 = vpop.f32.mrf.mxu0
        %v326 = vadd.f32 %v206, %v325
        %v327 = vpop.f32.mrf.mxu0
        %328 = vmatprep.mubr.f32.mxu0 0.0
        %329 = vmatmul.mubr.f32.gmra.mxu0 %v228
        %v330 = vpop.f32.mrf.mxu0
        %v331 = vadd.f32 %v206, %v330
        %v332 = vpop.f32.mrf.mxu0
        %333 = vdwg.mxu0
        %vm334 = vcmask 261120
        %335 = vst.msk [vmem:[%s172] sm:$0xff] %vm334, %v301
        %336 = vst.msk [vmem:[%s172 + $0x8] sm:$0xff] %vm334, %v306
        %337 = vst.msk [vmem:[%s172 + $0x10] sm:$0xff] %vm334, %v311
        %338 = vst.msk [vmem:[%s172 + $0x18] sm:$0xff] %vm334, %v316
        %339 = vst.msk [vmem:[%s172 + $0x20] sm:$0xff] %vm334, %v321
        %340 = vst.msk [vmem:[%s172 + $0x28] sm:$0xff] %vm334, %v326
        %341 = vst.msk [vmem:[%s172 + $0x30] sm:$0xff] %vm334, %v331
        %s342 = sand.u32 %s90, 1
        %s343 = sand.u32 %s90, 1
        %s344 = smul.addr %s343, 56
        %s345 = scalar_lea.vmem [#allocation2], %s344
        // Predicated region
        $region33: #{tpu_custom_call.1} parent=31 // pred_check
          %p346 = pneg %p100
        $region34: #{tpu_custom_call.1} parent=31 // pred_check_branch
          %348 = sbr.rel (%p346) target = $region36
        $region35: #{tpu_custom_call.1} parent=31 // pred_region
          %s349 = smul.u32 7, %s14
          %s350 = ssub.s32 25, %s349
          %p351 = scmp.lt.s32.totalorder %s350, 7
          %s352 = scalar_select %p351, %s350, 7
          %s353 = smul.u32 128, %s352
          %p354 = scmp.ne.s32.totalorder 0, %s353
          %s355 = smul.addr %s349, 8
          %s356 = scalar_lea.vmem %s3, %s355
          // Predicated region
          $region37: #{tpu_custom_call.1} parent=35 // pred_check
            %p357 = pneg %p354
          $region38: #{tpu_custom_call.1} parent=35 // pred_check_branch
            %359 = sbr.rel (%p357) target = $region40
          $region39: #{tpu_custom_call.1} parent=35 // pred_region
            // Predicated region
            $region41: #{tpu_custom_call.1} parent=39 // pred_check
              _
            $region42: #{tpu_custom_call.1} parent=39 // pred_check_branch
              %361 = sbr.rel (0) target = $region44
            $region43: #{tpu_custom_call.1} parent=39 // pred_region
              // Predicated region
              $region63: #{tpu_custom_call.1} parent=43 // pred_check
                _
              $region64: #{tpu_custom_call.1} parent=43 // pred_check_branch
                %424 = sbr.rel (0) target = $region66
              $region65: #{tpu_custom_call.1} parent=43 // pred_region
                %s425 = sdiv.u32.pop %s352, 7
                %s426 = srem.u32.pop %s352, 7
                // While loop
                $region67: #{tpu_custom_call.1} parent=65 // loop_pre_header
                  _
                $region68: #{tpu_custom_call.1} parent=65 // loop_header
                  %s428 = sphi 0, %s430
                  %p429 = scmp.ge.s32.totalorder %s428, %s425
                  %s433 = sphi 0, %s452
                  %s434 = sphi %s345, %s455
                  %s435 = sphi %s356, %s456
                $region69: #{tpu_custom_call.1} parent=65 // loop_header_branch
                  %432 = sbr.rel (%p429) target = $region73
                $region70: #{tpu_custom_call.1} parent=65 // loop_body
                  %v436 = vld [vmem:[%s434] sm:$0xff]
                  %437 = vst [vmem:[%s435] sm:$0xff] %v436
                  %v438 = vld [vmem:[%s434 + $0x8] sm:$0xff]
                  %439 = vst [vmem:[%s435 + $0x8] sm:$0xff] %v438
                  %v440 = vld [vmem:[%s434 + $0x10] sm:$0xff]
                  %441 = vst [vmem:[%s435 + $0x10] sm:$0xff] %v440
                  %v442 = vld [vmem:[%s434 + $0x18] sm:$0xff]
                  %443 = vst [vmem:[%s435 + $0x18] sm:$0xff] %v442
                  %v444 = vld [vmem:[%s434 + $0x20] sm:$0xff]
                  %445 = vst [vmem:[%s435 + $0x20] sm:$0xff] %v444
                  %v446 = vld [vmem:[%s434 + $0x28] sm:$0xff]
                  %447 = vst [vmem:[%s435 + $0x28] sm:$0xff] %v446
                  %v448 = vld [vmem:[%s434 + $0x30] sm:$0xff]
                  %449 = vst [vmem:[%s435 + $0x30] sm:$0xff] %v448
                  %s450 = sadd.s32 1, %s433
                  %p451 = scmp.ge.s32.totalorder %s450, %s425
                  %s452 = scalar_select %p451, 0, %s450
                  %s453 = smul.u32 %s452, 56
                  %s454 = smul.u32 %s452, 56
                  %s455 = scalar_lea.vmem %s345, %s453 [#allocation2]
                  %s456 = scalar_lea.vmem %s356, %s454
                $region71: #{tpu_custom_call.1} parent=65 // loop_footer
                  %s430 = sadd.s32 %s428, 1
                $region72: #{tpu_custom_call.1} parent=65 // loop_footer_branch
                  %427 = sbr.rel target = $region68
                $region73: #{tpu_custom_call.1} parent=65 // loop_exit
                  _
                %s457 = sdiv.u32.pop %s352, 7
                %s458 = srem.u32.pop %s352, 7
                %s459 = smul.u32 %s457, 7
                %s460 = smul.u32 8, %s459
                %s461 = scalar_lea.vmem %s345, %s460 [#allocation2]
                %s462 = smul.u32 8, %s459
                %s463 = scalar_lea.vmem %s356, %s462
                // While loop
                $region74: #{tpu_custom_call.1} parent=65 // loop_pre_header
                  _
                $region75: #{tpu_custom_call.1} parent=65 // loop_header
                  %s465 = sphi 0, %s467
                  %p466 = scmp.ge.s32.totalorder %s465, %s458
                  %s470 = sphi 0, %s477
                  %s471 = sphi %s461, %s480
                  %s472 = sphi %s463, %s481
                $region76: #{tpu_custom_call.1} parent=65 // loop_header_branch
                  %469 = sbr.rel (%p466) target = $region80
                $region77: #{tpu_custom_call.1} parent=65 // loop_body
                  %v473 = vld [vmem:[%s471] sm:$0xff]
                  %474 = vst [vmem:[%s472] sm:$0xff] %v473
                  %s475 = sadd.s32 1, %s470
                  %p476 = scmp.ge.s32.totalorder %s475, %s458
                  %s477 = scalar_select %p476, 0, %s475
                  %s478 = smul.u32 %s477, 8
                  %s479 = smul.u32 %s477, 8
                  %s480 = scalar_lea.vmem %s461, %s478 [#allocation2]
                  %s481 = scalar_lea.vmem %s463, %s479
                $region78: #{tpu_custom_call.1} parent=65 // loop_footer
                  %s467 = sadd.s32 %s465, 1
                $region79: #{tpu_custom_call.1} parent=65 // loop_footer_branch
                  %464 = sbr.rel target = $region75
                $region80: #{tpu_custom_call.1} parent=65 // loop_exit
                  _
              $region66: #{tpu_custom_call.1} parent=43 // pred_fallthru
                _
              // Predicated region
              $region81: #{tpu_custom_call.1} parent=43 // pred_check
                _
              $region82: #{tpu_custom_call.1} parent=43 // pred_check_branch
                %483 = sbr.rel target = $region84
              $region83: #{tpu_custom_call.1} parent=43 // pred_region
                _
              $region84: #{tpu_custom_call.1} parent=43 // pred_fallthru
                _
            $region44: #{tpu_custom_call.1} parent=39 // pred_fallthru
              _
            // Predicated region
            $region45: #{tpu_custom_call.1} parent=39 // pred_check
              _
            $region46: #{tpu_custom_call.1} parent=39 // pred_check_branch
              %363 = sbr.rel target = $region48
            $region47: #{tpu_custom_call.1} parent=39 // pred_region
              %s365 = ssub.s32 256, 1
              %s366 = sdiv.u32.pop %s352, 7
              %s367 = srem.u32.pop %s352, 7
              // While loop
              $region49: #{tpu_custom_call.1} parent=47 // loop_pre_header
                _
              $region50: #{tpu_custom_call.1} parent=47 // loop_header
                %s369 = sphi 0, %s371
                %p370 = scmp.ge.s32.totalorder %s369, %s366
                %s374 = sphi 0, %s393
                %s375 = sphi %s345, %s396
                %s376 = sphi %s356, %s397
              $region51: #{tpu_custom_call.1} parent=47 // loop_header_branch
                %373 = sbr.rel (%p370) target = $region55
              $region52: #{tpu_custom_call.1} parent=47 // loop_body
                %v377 = vld [vmem:[%s375] sm:%s365]
                %378 = vst [vmem:[%s376] sm:%s365] %v377
                %v379 = vld [vmem:[%s375 + $0x8] sm:%s365]
                %380 = vst [vmem:[%s376 + $0x8] sm:%s365] %v379
                %v381 = vld [vmem:[%s375 + $0x10] sm:%s365]
                %382 = vst [vmem:[%s376 + $0x10] sm:%s365] %v381
                %v383 = vld [vmem:[%s375 + $0x18] sm:%s365]
                %384 = vst [vmem:[%s376 + $0x18] sm:%s365] %v383
                %v385 = vld [vmem:[%s375 + $0x20] sm:%s365]
                %386 = vst [vmem:[%s376 + $0x20] sm:%s365] %v385
                %v387 = vld [vmem:[%s375 + $0x28] sm:%s365]
                %388 = vst [vmem:[%s376 + $0x28] sm:%s365] %v387
                %v389 = vld [vmem:[%s375 + $0x30] sm:%s365]
                %390 = vst [vmem:[%s376 + $0x30] sm:%s365] %v389
                %s391 = sadd.s32 1, %s374
                %p392 = scmp.ge.s32.totalorder %s391, %s366
                %s393 = scalar_select %p392, 0, %s391
                %s394 = smul.u32 %s393, 56
                %s395 = smul.u32 %s393, 56
                %s396 = scalar_lea.vmem %s345, %s394 [#allocation2]
                %s397 = scalar_lea.vmem %s356, %s395
              $region53: #{tpu_custom_call.1} parent=47 // loop_footer
                %s371 = sadd.s32 %s369, 1
              $region54: #{tpu_custom_call.1} parent=47 // loop_footer_branch
                %368 = sbr.rel target = $region50
              $region55: #{tpu_custom_call.1} parent=47 // loop_exit
                _
              %s398 = sdiv.u32.pop %s352, 7
              %s399 = srem.u32.pop %s352, 7
              %s400 = smul.u32 %s398, 7
              %s401 = smul.u32 8, %s400
              %s402 = scalar_lea.vmem %s345, %s401 [#allocation2]
              %s403 = smul.u32 8, %s400
              %s404 = scalar_lea.vmem %s356, %s403
              // While loop
              $region56: #{tpu_custom_call.1} parent=47 // loop_pre_header
                _
              $region57: #{tpu_custom_call.1} parent=47 // loop_header
                %s406 = sphi 0, %s408
                %p407 = scmp.ge.s32.totalorder %s406, %s399
                %s411 = sphi 0, %s418
                %s412 = sphi %s402, %s421
                %s413 = sphi %s404, %s422
              $region58: #{tpu_custom_call.1} parent=47 // loop_header_branch
                %410 = sbr.rel (%p407) target = $region62
              $region59: #{tpu_custom_call.1} parent=47 // loop_body
                %v414 = vld [vmem:[%s412] sm:%s365]
                %415 = vst [vmem:[%s413] sm:%s365] %v414
                %s416 = sadd.s32 1, %s411
                %p417 = scmp.ge.s32.totalorder %s416, %s399
                %s418 = scalar_select %p417, 0, %s416
                %s419 = smul.u32 %s418, 8
                %s420 = smul.u32 %s418, 8
                %s421 = scalar_lea.vmem %s402, %s419 [#allocation2]
                %s422 = scalar_lea.vmem %s404, %s420
              $region60: #{tpu_custom_call.1} parent=47 // loop_footer
                %s408 = sadd.s32 %s406, 1
              $region61: #{tpu_custom_call.1} parent=47 // loop_footer_branch
                %405 = sbr.rel target = $region57
              $region62: #{tpu_custom_call.1} parent=47 // loop_exit
                _
            $region48: #{tpu_custom_call.1} parent=39 // pred_fallthru
              _
          $region40: #{tpu_custom_call.1} parent=35 // pred_fallthru
            _
          %484 = vnop
        $region36: #{tpu_custom_call.1} parent=31 // pred_fallthru
          _
      $region32: #{tpu_custom_call.1} parent=5 // pred_fallthru
        _
      %p485 = scmp.le.s32.totalorder 2, %s9
      // Predicated region
      $region85: #{tpu_custom_call.1} parent=5 // pred_check
        %p486 = pneg %p485
      $region86: #{tpu_custom_call.1} parent=5 // pred_check_branch
        %488 = sbr.rel (%p486) target = $region88
      $region87: #{tpu_custom_call.1} parent=5 // pred_region
        %s489 = ssub.s32 %s9, 2
        // Predicated region
        $region89: #{tpu_custom_call.1} parent=87 // pred_check
          %p490 = pneg %p106
        $region90: #{tpu_custom_call.1} parent=87 // pred_check_branch
          %492 = sbr.rel (%p490) target = $region92
        $region91: #{tpu_custom_call.1} parent=87 // pred_region
          %s493 = sand.u32 %s91, 1
          %s494 = sand.u32 %s91, 1
          %s495 = smul.addr %s494, 56
          %s496 = scalar_lea.vmem [#allocation2], %s495
        $region92: #{tpu_custom_call.1} parent=87 // pred_fallthru
          _
      $region88: #{tpu_custom_call.1} parent=5 // pred_fallthru
        _
    $region6: #{tpu_custom_call.1} parent=1 // loop_footer
      %s13 = sadd.s32 1, %s9
    $region7: #{tpu_custom_call.1} parent=1 // loop_footer_branch
      %8 = sbr.rel target = $region3
    $region8: #{tpu_custom_call.1} parent=1 // loop_exit
      _

</llo_original>
